<compile_context>
chip_gen: v7x
topology: tpu7x:2x2x1
jax: 0.10.0
libtpu: 0.0.40
codegen_flags: <defaults>
</compile_context>

<pallas_src>
import jax
import jax.numpy as jnp
from jax.experimental import pallas as pl
from jax.experimental.pallas import tpu as pltpu

HIDDEN = 32


def rnn_kernel(x_ref, w_ref, v_ref, out_ref):
    """Two-layer tanh RNN over the full sequence + final Linear, in one kernel.

    x_ref:   (T*B, 1) f32  input column, t-major (row = t*B + b)
    w_ref:   (3H, H)  bf16 weight slab: rows [0:H]=W_hh0^T, [H:2H]=W_ih1^T,
                                              [2H:3H]=W_hh1^T
    v_ref:   (8, H)   f32  vector slab: row0=W_ih0^T, row1=b_ih0+b_hh0,
                           row2=b_ih1+b_hh1, row3=fc.weight, row4[0]=fc.bias
    out_ref: (B, 1)   f32  fc(out[:, -1, :])
    """
    TB = x_ref.shape[0]
    H = w_ref.shape[1]
    B = out_ref.shape[0]
    T = TB // B
    f32 = jnp.float32
    bf16 = jnp.bfloat16

    # Weight slab: three static, tile-aligned bf16 slices (single DMA'd array).
    whh0 = w_ref[0:H, :]              # (H, H)
    wih1 = w_ref[H:2 * H, :]          # (H, H)
    whh1 = w_ref[2 * H:3 * H, :]      # (H, H)

    # Vector slab: one load, then cheap value slices.
    v = v_ref[...]                    # (8, H)
    wih0_row = v[0:1, :]              # (1, H)
    b0_row = v[1:2, :]                # (1, H)
    b1_row = v[2:3, :]                # (1, H)
    wfc_row = v[3:4, :]               # (1, H)
    bfc = v[4:5, 0:1]                 # (1, 1)

    # Layer-0 input projection for ALL timesteps at once (h-independent,
    # input feature is scalar): one broadcast multiply in the prologue instead
    # of 8 per-step broadcasts.
    x_col = x_ref[...]                                              # (T*B, 1)
    xproj_all = (x_col * jnp.broadcast_to(wih0_row, (TB, H))
                 + jnp.broadcast_to(b0_row, (TB, H)))               # (T*B, H)

    b1_b = jnp.broadcast_to(b1_row, (B, H))                         # hoisted

    # t = 0: both hidden states start at zero -> recurrent matmuls vanish.
    h0 = jnp.tanh(xproj_all[0:B, :])
    h1 = jnp.tanh(jnp.dot(h0.astype(bf16), wih1, preferred_element_type=f32)
                  + b1_b)

    # Fully unrolled recurrence.  Per-step critical chain:
    #   dot(h0, Whh0) -> tanh -> dot(h0_new, Wih1) -> tanh
    # dot(h1_prev, Whh1) depends only on the previous step, so it is issued
    # first and overlaps the layer-0 work (no concat on the chain).
    for t in range(1, T):
        h1_rec = jnp.dot(h1.astype(bf16), whh1, preferred_element_type=f32)
        h0 = jnp.tanh(xproj_all[t * B:(t + 1) * B, :]
                      + jnp.dot(h0.astype(bf16), whh0,
                                preferred_element_type=f32))
        h1 = jnp.tanh(jnp.dot(h0.astype(bf16), wih1,
                              preferred_element_type=f32)
                      + h1_rec + b1_b)

    # Final Linear(32 -> 1): VPU multiply + lane reduction (f32), fc bias from
    # the vector slab (no standalone (1,1) input).
    wfc_b = jnp.broadcast_to(wfc_row, (B, H))
    out_ref[...] = (jnp.sum(h1 * wfc_b, axis=-1, keepdims=True)
                    + jnp.broadcast_to(bfc, (B, 1)))


def net_forward(x_btf, w_slab, v_slab):
    """x_btf: (B, T, 1) float32, batch-first exactly like the PyTorch module."""
    B, T, F = x_btf.shape
    assert F == 1
    # t-major column so per-step slices in the kernel are contiguous sublane
    # blocks (layout plumbing only, no compute hoisted into the wrapper).
    x_col = jnp.transpose(x_btf[:, :, 0]).reshape(T * B, 1).astype(jnp.float32)

    vmem = pl.BlockSpec(memory_space=pltpu.MemorySpace.VMEM)
    return pl.pallas_call(
        rnn_kernel,
        out_shape=jax.ShapeDtypeStruct((B, 1), jnp.float32),
        in_specs=[vmem, vmem, vmem],
        out_specs=vmem,
    )(x_col, w_slab, v_slab)


def init_params(key, hidden=HIDDEN):
    """Deterministic synthetic parameters with the PyTorch shapes, packed into
    the kernel layout (2 param arrays) plus unfused f32 copies for the ref."""
    keys = jax.random.split(key, 10)
    scale = 1.0 / jnp.sqrt(jnp.float32(hidden))

    def u(k, shape):
        return jax.random.uniform(k, shape, jnp.float32, -scale, scale)

    # PyTorch parameter shapes:
    w_ih0 = u(keys[0], (hidden, 1))        # rnn.weight_ih_l0
    w_hh0 = u(keys[1], (hidden, hidden))   # rnn.weight_hh_l0
    b_ih0 = u(keys[2], (hidden,))          # rnn.bias_ih_l0
    b_hh0 = u(keys[3], (hidden,))          # rnn.bias_hh_l0
    w_ih1 = u(keys[4], (hidden, hidden))   # rnn.weight_ih_l1
    w_hh1 = u(keys[5], (hidden, hidden))   # rnn.weight_hh_l1
    b_ih1 = u(keys[6], (hidden,))          # rnn.bias_ih_l1
    b_hh1 = u(keys[7], (hidden,))          # rnn.bias_hh_l1
    w_fc = u(keys[8], (1, hidden))         # fc.weight
    b_fc = u(keys[9], (1,))                # fc.bias

    # bf16 matrix slab (single DMA), pre-transposed for right-multiplication.
    w_slab = jnp.concatenate([w_hh0.T, w_ih1.T, w_hh1.T],
                             axis=0).astype(jnp.bfloat16)          # (3H, H)

    # f32 vector slab (single DMA): rows padded to 8 sublanes.
    v_slab = jnp.zeros((8, hidden), jnp.float32)
    v_slab = v_slab.at[0, :].set(w_ih0[:, 0])        # W_ih0^T row
    v_slab = v_slab.at[1, :].set(b_ih0 + b_hh0)      # fused layer-0 bias
    v_slab = v_slab.at[2, :].set(b_ih1 + b_hh1)      # fused layer-1 bias
    v_slab = v_slab.at[3, :].set(w_fc[0, :])         # fc weight row
    v_slab = v_slab.at[4, 0].set(b_fc[0])            # fc bias (lane 0)

    return {
        "w_slab": w_slab,
        "v_slab": v_slab,
        # Unfused f32 originals for the pure-JAX reference (validates the
        # packing / fusion math against the true PyTorch formulation).
        "ref": {
            "w_ih0": w_ih0, "w_hh0": w_hh0, "b0": b_ih0 + b_hh0,
            "w_ih1": w_ih1, "w_hh1": w_hh1, "b1": b_ih1 + b_hh1,
            "w_fc": w_fc, "b_fc": b_fc,
        },
    }


def net_forward_ref(x_btf, r):
    """Pure-JAX f32 reference with the PyTorch nn.RNN + Linear semantics."""
    B, T, _ = x_btf.shape
    H = r["w_hh0"].shape[0]
    h0 = jnp.zeros((B, H), jnp.float32)
    h1 = jnp.zeros((B, H), jnp.float32)
    for t in range(T):
        x_t = x_btf[:, t, :].astype(jnp.float32)                  # (B, 1)
        h0 = jnp.tanh(x_t @ r["w_ih0"].T + h0 @ r["w_hh0"].T + r["b0"])
        h1 = jnp.tanh(h0 @ r["w_ih1"].T + h1 @ r["w_hh1"].T + r["b1"])
    return h1 @ r["w_fc"].T + r["b_fc"]                           # (B, 1)


if __name__ == "__main__":
    key = jax.random.PRNGKey(0)
    k_x, k_p = jax.random.split(key)

    B, T = 2, 8                      # small shapes: batch=2, seq=8, feature=1
    x = jax.random.normal(k_x, (B, T, 1), dtype=jnp.float32)
    params = init_params(k_p)

    fwd = jax.jit(net_forward)
    out = jax.block_until_ready(fwd(x, params["w_slab"], params["v_slab"]))

    ref = net_forward_ref(x, params["ref"])
    assert out.shape == (B, 1), out.shape
    # bf16 MXU operands compound rounding over 8 recurrent tanh steps ->
    # relaxed tolerance vs the pure-f32 reference.
    assert jnp.allclose(out, ref, atol=5e-2, rtol=5e-2), (out, ref)

    print("KERNEL_OK")
</pallas_src>

<mosaic_0001>
module attributes {stable_mosaic.version = 11 : i64} {
  func.func @rnn_kernel(%arg0: memref<16x1xf32, #tpu.memory_space<vmem>>, %arg1: memref<96x32xbf16, #tpu.memory_space<vmem>>, %arg2: memref<8x32xf32, #tpu.memory_space<vmem>>, %arg3: memref<2x1xf32, #tpu.memory_space<vmem>>) attributes {dimension_semantics = [], scalar_prefetch = 0 : i64, scratch_operands = 0 : i64, tpu.core_type = #tpu.core_type<tc>} {
    %c0 = arith.constant 0 : index
    %c0_0 = arith.constant 0 : index
    %0 = vector.load %arg1[%c0, %c0_0] : memref<96x32xbf16, #tpu.memory_space<vmem>>, vector<32x32xbf16>
    %c32 = arith.constant 32 : index
    %c0_1 = arith.constant 0 : index
    %1 = vector.load %arg1[%c32, %c0_1] : memref<96x32xbf16, #tpu.memory_space<vmem>>, vector<32x32xbf16>
    %c64 = arith.constant 64 : index
    %c0_2 = arith.constant 0 : index
    %2 = vector.load %arg1[%c64, %c0_2] : memref<96x32xbf16, #tpu.memory_space<vmem>>, vector<32x32xbf16>
    %c0_3 = arith.constant 0 : index
    %c0_4 = arith.constant 0 : index
    %3 = vector.load %arg2[%c0_3, %c0_4] : memref<8x32xf32, #tpu.memory_space<vmem>>, vector<8x32xf32>
    %4 = vector.extract_strided_slice %3 {offsets = [0, 0], sizes = [1, 32], strides = [1, 1]} : vector<8x32xf32> to vector<1x32xf32>
    %5 = vector.extract_strided_slice %3 {offsets = [1, 0], sizes = [1, 32], strides = [1, 1]} : vector<8x32xf32> to vector<1x32xf32>
    %6 = vector.extract_strided_slice %3 {offsets = [2, 0], sizes = [1, 32], strides = [1, 1]} : vector<8x32xf32> to vector<1x32xf32>
    %7 = vector.extract_strided_slice %3 {offsets = [3, 0], sizes = [1, 32], strides = [1, 1]} : vector<8x32xf32> to vector<1x32xf32>
    %8 = vector.extract_strided_slice %3 {offsets = [4, 0], sizes = [1, 1], strides = [1, 1]} : vector<8x32xf32> to vector<1x1xf32>
    %c0_5 = arith.constant 0 : index
    %c0_6 = arith.constant 0 : index
    %9 = vector.load %arg0[%c0_5, %c0_6] : memref<16x1xf32, #tpu.memory_space<vmem>>, vector<16x1xf32>
    %10 = vector.shape_cast %4 : vector<1x32xf32> to vector<1x32xf32>
    %11 = vector.broadcast %10 : vector<1x32xf32> to vector<16x32xf32>
    %12 = vector.broadcast %9 : vector<16x1xf32> to vector<16x32xf32>
    %13 = arith.mulf %12, %11 : vector<16x32xf32>
    %14 = vector.shape_cast %5 : vector<1x32xf32> to vector<1x32xf32>
    %15 = vector.broadcast %14 : vector<1x32xf32> to vector<16x32xf32>
    %16 = arith.addf %13, %15 : vector<16x32xf32>
    %17 = vector.shape_cast %6 : vector<1x32xf32> to vector<1x32xf32>
    %18 = vector.broadcast %17 : vector<1x32xf32> to vector<2x32xf32>
    %19 = vector.extract_strided_slice %16 {offsets = [0, 0], sizes = [2, 32], strides = [1, 1]} : vector<16x32xf32> to vector<2x32xf32>
    %20 = math.tanh %19 : vector<2x32xf32>
    %21 = arith.truncf %20 : vector<2x32xf32> to vector<2x32xbf16>
    %cst = arith.constant dense<0.000000e+00> : vector<2x32xf32>
    %22 = tpu.matmul %21, %1, %cst {dimension_numbers = #tpu.dot_dimension_numbers<[1], [0], [0], [1], [0, 0, 1, 1], [], []>} : vector<2x32xbf16>, vector<32x32xbf16>, vector<2x32xf32> -> vector<2x32xf32>
    %23 = arith.addf %22, %18 : vector<2x32xf32>
    %24 = math.tanh %23 : vector<2x32xf32>
    %25 = arith.truncf %24 : vector<2x32xf32> to vector<2x32xbf16>
    %cst_7 = arith.constant dense<0.000000e+00> : vector<2x32xf32>
    %26 = tpu.matmul %25, %2, %cst_7 {dimension_numbers = #tpu.dot_dimension_numbers<[1], [0], [0], [1], [0, 0, 1, 1], [], []>} : vector<2x32xbf16>, vector<32x32xbf16>, vector<2x32xf32> -> vector<2x32xf32>
    %27 = vector.extract_strided_slice %16 {offsets = [2, 0], sizes = [2, 32], strides = [1, 1]} : vector<16x32xf32> to vector<2x32xf32>
    %28 = arith.truncf %20 : vector<2x32xf32> to vector<2x32xbf16>
    %cst_8 = arith.constant dense<0.000000e+00> : vector<2x32xf32>
    %29 = tpu.matmul %28, %0, %cst_8 {dimension_numbers = #tpu.dot_dimension_numbers<[1], [0], [0], [1], [0, 0, 1, 1], [], []>} : vector<2x32xbf16>, vector<32x32xbf16>, vector<2x32xf32> -> vector<2x32xf32>
    %30 = arith.addf %27, %29 : vector<2x32xf32>
    %31 = math.tanh %30 : vector<2x32xf32>
    %32 = arith.truncf %31 : vector<2x32xf32> to vector<2x32xbf16>
    %cst_9 = arith.constant dense<0.000000e+00> : vector<2x32xf32>
    %33 = tpu.matmul %32, %1, %cst_9 {dimension_numbers = #tpu.dot_dimension_numbers<[1], [0], [0], [1], [0, 0, 1, 1], [], []>} : vector<2x32xbf16>, vector<32x32xbf16>, vector<2x32xf32> -> vector<2x32xf32>
    %34 = arith.addf %33, %26 : vector<2x32xf32>
    %35 = arith.addf %34, %18 : vector<2x32xf32>
    %36 = math.tanh %35 : vector<2x32xf32>
    %37 = arith.truncf %36 : vector<2x32xf32> to vector<2x32xbf16>
    %cst_10 = arith.constant dense<0.000000e+00> : vector<2x32xf32>
    %38 = tpu.matmul %37, %2, %cst_10 {dimension_numbers = #tpu.dot_dimension_numbers<[1], [0], [0], [1], [0, 0, 1, 1], [], []>} : vector<2x32xbf16>, vector<32x32xbf16>, vector<2x32xf32> -> vector<2x32xf32>
    %39 = vector.extract_strided_slice %16 {offsets = [4, 0], sizes = [2, 32], strides = [1, 1]} : vector<16x32xf32> to vector<2x32xf32>
    %40 = arith.truncf %31 : vector<2x32xf32> to vector<2x32xbf16>
    %cst_11 = arith.constant dense<0.000000e+00> : vector<2x32xf32>
    %41 = tpu.matmul %40, %0, %cst_11 {dimension_numbers = #tpu.dot_dimension_numbers<[1], [0], [0], [1], [0, 0, 1, 1], [], []>} : vector<2x32xbf16>, vector<32x32xbf16>, vector<2x32xf32> -> vector<2x32xf32>
    %42 = arith.addf %39, %41 : vector<2x32xf32>
    %43 = math.tanh %42 : vector<2x32xf32>
    %44 = arith.truncf %43 : vector<2x32xf32> to vector<2x32xbf16>
    %cst_12 = arith.constant dense<0.000000e+00> : vector<2x32xf32>
    %45 = tpu.matmul %44, %1, %cst_12 {dimension_numbers = #tpu.dot_dimension_numbers<[1], [0], [0], [1], [0, 0, 1, 1], [], []>} : vector<2x32xbf16>, vector<32x32xbf16>, vector<2x32xf32> -> vector<2x32xf32>
    %46 = arith.addf %45, %38 : vector<2x32xf32>
    %47 = arith.addf %46, %18 : vector<2x32xf32>
    %48 = math.tanh %47 : vector<2x32xf32>
    %49 = arith.truncf %48 : vector<2x32xf32> to vector<2x32xbf16>
    %cst_13 = arith.constant dense<0.000000e+00> : vector<2x32xf32>
    %50 = tpu.matmul %49, %2, %cst_13 {dimension_numbers = #tpu.dot_dimension_numbers<[1], [0], [0], [1], [0, 0, 1, 1], [], []>} : vector<2x32xbf16>, vector<32x32xbf16>, vector<2x32xf32> -> vector<2x32xf32>
    %51 = vector.extract_strided_slice %16 {offsets = [6, 0], sizes = [2, 32], strides = [1, 1]} : vector<16x32xf32> to vector<2x32xf32>
    %52 = arith.truncf %43 : vector<2x32xf32> to vector<2x32xbf16>
    %cst_14 = arith.constant dense<0.000000e+00> : vector<2x32xf32>
    %53 = tpu.matmul %52, %0, %cst_14 {dimension_numbers = #tpu.dot_dimension_numbers<[1], [0], [0], [1], [0, 0, 1, 1], [], []>} : vector<2x32xbf16>, vector<32x32xbf16>, vector<2x32xf32> -> vector<2x32xf32>
    %54 = arith.addf %51, %53 : vector<2x32xf32>
    %55 = math.tanh %54 : vector<2x32xf32>
    %56 = arith.truncf %55 : vector<2x32xf32> to vector<2x32xbf16>
    %cst_15 = arith.constant dense<0.000000e+00> : vector<2x32xf32>
    %57 = tpu.matmul %56, %1, %cst_15 {dimension_numbers = #tpu.dot_dimension_numbers<[1], [0], [0], [1], [0, 0, 1, 1], [], []>} : vector<2x32xbf16>, vector<32x32xbf16>, vector<2x32xf32> -> vector<2x32xf32>
    %58 = arith.addf %57, %50 : vector<2x32xf32>
    %59 = arith.addf %58, %18 : vector<2x32xf32>
    %60 = math.tanh %59 : vector<2x32xf32>
    %61 = arith.truncf %60 : vector<2x32xf32> to vector<2x32xbf16>
    %cst_16 = arith.constant dense<0.000000e+00> : vector<2x32xf32>
    %62 = tpu.matmul %61, %2, %cst_16 {dimension_numbers = #tpu.dot_dimension_numbers<[1], [0], [0], [1], [0, 0, 1, 1], [], []>} : vector<2x32xbf16>, vector<32x32xbf16>, vector<2x32xf32> -> vector<2x32xf32>
    %63 = vector.extract_strided_slice %16 {offsets = [8, 0], sizes = [2, 32], strides = [1, 1]} : vector<16x32xf32> to vector<2x32xf32>
    %64 = arith.truncf %55 : vector<2x32xf32> to vector<2x32xbf16>
    %cst_17 = arith.constant dense<0.000000e+00> : vector<2x32xf32>
    %65 = tpu.matmul %64, %0, %cst_17 {dimension_numbers = #tpu.dot_dimension_numbers<[1], [0], [0], [1], [0, 0, 1, 1], [], []>} : vector<2x32xbf16>, vector<32x32xbf16>, vector<2x32xf32> -> vector<2x32xf32>
    %66 = arith.addf %63, %65 : vector<2x32xf32>
    %67 = math.tanh %66 : vector<2x32xf32>
    %68 = arith.truncf %67 : vector<2x32xf32> to vector<2x32xbf16>
    %cst_18 = arith.constant dense<0.000000e+00> : vector<2x32xf32>
    %69 = tpu.matmul %68, %1, %cst_18 {dimension_numbers = #tpu.dot_dimension_numbers<[1], [0], [0], [1], [0, 0, 1, 1], [], []>} : vector<2x32xbf16>, vector<32x32xbf16>, vector<2x32xf32> -> vector<2x32xf32>
    %70 = arith.addf %69, %62 : vector<2x32xf32>
    %71 = arith.addf %70, %18 : vector<2x32xf32>
    %72 = math.tanh %71 : vector<2x32xf32>
    %73 = arith.truncf %72 : vector<2x32xf32> to vector<2x32xbf16>
    %cst_19 = arith.constant dense<0.000000e+00> : vector<2x32xf32>
    %74 = tpu.matmul %73, %2, %cst_19 {dimension_numbers = #tpu.dot_dimension_numbers<[1], [0], [0], [1], [0, 0, 1, 1], [], []>} : vector<2x32xbf16>, vector<32x32xbf16>, vector<2x32xf32> -> vector<2x32xf32>
    %75 = vector.extract_strided_slice %16 {offsets = [10, 0], sizes = [2, 32], strides = [1, 1]} : vector<16x32xf32> to vector<2x32xf32>
    %76 = arith.truncf %67 : vector<2x32xf32> to vector<2x32xbf16>
    %cst_20 = arith.constant dense<0.000000e+00> : vector<2x32xf32>
    %77 = tpu.matmul %76, %0, %cst_20 {dimension_numbers = #tpu.dot_dimension_numbers<[1], [0], [0], [1], [0, 0, 1, 1], [], []>} : vector<2x32xbf16>, vector<32x32xbf16>, vector<2x32xf32> -> vector<2x32xf32>
    %78 = arith.addf %75, %77 : vector<2x32xf32>
    %79 = math.tanh %78 : vector<2x32xf32>
    %80 = arith.truncf %79 : vector<2x32xf32> to vector<2x32xbf16>
    %cst_21 = arith.constant dense<0.000000e+00> : vector<2x32xf32>
    %81 = tpu.matmul %80, %1, %cst_21 {dimension_numbers = #tpu.dot_dimension_numbers<[1], [0], [0], [1], [0, 0, 1, 1], [], []>} : vector<2x32xbf16>, vector<32x32xbf16>, vector<2x32xf32> -> vector<2x32xf32>
    %82 = arith.addf %81, %74 : vector<2x32xf32>
    %83 = arith.addf %82, %18 : vector<2x32xf32>
    %84 = math.tanh %83 : vector<2x32xf32>
    %85 = arith.truncf %84 : vector<2x32xf32> to vector<2x32xbf16>
    %cst_22 = arith.constant dense<0.000000e+00> : vector<2x32xf32>
    %86 = tpu.matmul %85, %2, %cst_22 {dimension_numbers = #tpu.dot_dimension_numbers<[1], [0], [0], [1], [0, 0, 1, 1], [], []>} : vector<2x32xbf16>, vector<32x32xbf16>, vector<2x32xf32> -> vector<2x32xf32>
    %87 = vector.extract_strided_slice %16 {offsets = [12, 0], sizes = [2, 32], strides = [1, 1]} : vector<16x32xf32> to vector<2x32xf32>
    %88 = arith.truncf %79 : vector<2x32xf32> to vector<2x32xbf16>
    %cst_23 = arith.constant dense<0.000000e+00> : vector<2x32xf32>
    %89 = tpu.matmul %88, %0, %cst_23 {dimension_numbers = #tpu.dot_dimension_numbers<[1], [0], [0], [1], [0, 0, 1, 1], [], []>} : vector<2x32xbf16>, vector<32x32xbf16>, vector<2x32xf32> -> vector<2x32xf32>
    %90 = arith.addf %87, %89 : vector<2x32xf32>
    %91 = math.tanh %90 : vector<2x32xf32>
    %92 = arith.truncf %91 : vector<2x32xf32> to vector<2x32xbf16>
    %cst_24 = arith.constant dense<0.000000e+00> : vector<2x32xf32>
    %93 = tpu.matmul %92, %1, %cst_24 {dimension_numbers = #tpu.dot_dimension_numbers<[1], [0], [0], [1], [0, 0, 1, 1], [], []>} : vector<2x32xbf16>, vector<32x32xbf16>, vector<2x32xf32> -> vector<2x32xf32>
    %94 = arith.addf %93, %86 : vector<2x32xf32>
    %95 = arith.addf %94, %18 : vector<2x32xf32>
    %96 = math.tanh %95 : vector<2x32xf32>
    %97 = arith.truncf %96 : vector<2x32xf32> to vector<2x32xbf16>
    %cst_25 = arith.constant dense<0.000000e+00> : vector<2x32xf32>
    %98 = tpu.matmul %97, %2, %cst_25 {dimension_numbers = #tpu.dot_dimension_numbers<[1], [0], [0], [1], [0, 0, 1, 1], [], []>} : vector<2x32xbf16>, vector<32x32xbf16>, vector<2x32xf32> -> vector<2x32xf32>
    %99 = vector.extract_strided_slice %16 {offsets = [14, 0], sizes = [2, 32], strides = [1, 1]} : vector<16x32xf32> to vector<2x32xf32>
    %100 = arith.truncf %91 : vector<2x32xf32> to vector<2x32xbf16>
    %cst_26 = arith.constant dense<0.000000e+00> : vector<2x32xf32>
    %101 = tpu.matmul %100, %0, %cst_26 {dimension_numbers = #tpu.dot_dimension_numbers<[1], [0], [0], [1], [0, 0, 1, 1], [], []>} : vector<2x32xbf16>, vector<32x32xbf16>, vector<2x32xf32> -> vector<2x32xf32>
    %102 = arith.addf %99, %101 : vector<2x32xf32>
    %103 = math.tanh %102 : vector<2x32xf32>
    %104 = arith.truncf %103 : vector<2x32xf32> to vector<2x32xbf16>
    %cst_27 = arith.constant dense<0.000000e+00> : vector<2x32xf32>
    %105 = tpu.matmul %104, %1, %cst_27 {dimension_numbers = #tpu.dot_dimension_numbers<[1], [0], [0], [1], [0, 0, 1, 1], [], []>} : vector<2x32xbf16>, vector<32x32xbf16>, vector<2x32xf32> -> vector<2x32xf32>
    %106 = arith.addf %105, %98 : vector<2x32xf32>
    %107 = arith.addf %106, %18 : vector<2x32xf32>
    %108 = math.tanh %107 : vector<2x32xf32>
    %109 = vector.shape_cast %7 : vector<1x32xf32> to vector<1x32xf32>
    %110 = vector.broadcast %109 : vector<1x32xf32> to vector<2x32xf32>
    %111 = arith.mulf %108, %110 : vector<2x32xf32>
    %cst_28 = arith.constant dense<0.000000e+00> : vector<2xf32>
    %112 = vector.multi_reduction <add>, %111, %cst_28 [1] : vector<2x32xf32> to vector<2xf32>
    %113 = vector.shape_cast %112 : vector<2xf32> to vector<2x1xf32>
    %114 = vector.shape_cast %8 : vector<1x1xf32> to vector<1x1xf32>
    %115 = vector.broadcast %114 : vector<1x1xf32> to vector<2x1xf32>
    %116 = arith.addf %113, %115 : vector<2x1xf32>
    %c0_29 = arith.constant 0 : index
    %c0_30 = arith.constant 0 : index
    %117 = vector.load %arg3[%c0_29, %c0_30] : memref<2x1xf32, #tpu.memory_space<vmem>>, vector<2x1xf32>
    tpu.vector_store %arg3[%c0_29, %c0_30], %116 {strides = array<i32>} : memref<2x1xf32, #tpu.memory_space<vmem>>, vector<2x1xf32>,
    return
  }
}

</mosaic_0001>

<llo_original>
// kernel: net_forward.1
$region0: #{net_forward.1}
  #allocation0 [shape = 'u32[]', space=smem, size = 0x4, offset = 0x4, fixed_abs, tag = 'smem constant byte address 0x4 - core index']
  #allocation1 [shape = 'u32[144,128]{1,0:T(1,128)}', space=vmem, size = 0x12000, scoped, tag = 'internal scratch']
  %s0 = inlined_call_operand.vmem [shape: f32[16,1], index: 0, kind: input, shape index: {}]
  %s1 = inlined_call_operand.vmem [shape: bf16[96,32], index: 1, kind: input, shape index: {}]
  %s2 = inlined_call_operand.vmem [shape: f32[8,32], index: 2, kind: input, shape index: {}]
  %s3 = inlined_call_operand.vmem [shape: f32[2,1], index: 3, kind: output, shape index: {}]
  %s4 = sld [smem:[#allocation0]]
  $region22: #{net_forward.1} parent=0
    _
  %s6 = ssub.s32 1, %s4
  %s7 = scalar_select 0, %s6, %s4
  // Predicated region
  $region2: #{net_forward.1} parent=0 // pred_check
    _
  $region3: #{net_forward.1} parent=0 // pred_check_branch
    %9 = sbr.rel (0) target = $region5
  $region4: #{net_forward.1} parent=0 // pred_region
    _
  $region5: #{net_forward.1} parent=0 // pred_fallthru
    _
  // Predicated region
  $region6: #{net_forward.1} parent=0 // pred_check
    _
  $region7: #{net_forward.1} parent=0 // pred_check_branch
    %11 = sbr.rel (0) target = $region9
  $region8: #{net_forward.1} parent=0 // pred_region
    _
  $region9: #{net_forward.1} parent=0 // pred_fallthru
    _
  // Predicated region
  $region10: #{net_forward.1} parent=0 // pred_check
    _
  $region11: #{net_forward.1} parent=0 // pred_check_branch
    %13 = sbr.rel (0) target = $region13
  $region12: #{net_forward.1} parent=0 // pred_region
    _
  $region13: #{net_forward.1} parent=0 // pred_fallthru
    _
  %v15 = vld [vmem:[%s1] sm:$0xf]
  %v16 = vld [vmem:[%s1 + $0x4] sm:$0xf]
  %v17 = vld [vmem:[%s1 + $0x8] sm:$0xf]
  %v18 = vld [vmem:[%s1 + $0xc] sm:$0xf]
  %v19 = vld [vmem:[%s1 + $0x10] sm:$0xf]
  %v20 = vld [vmem:[%s1 + $0x14] sm:$0xf]
  %v21 = vld [vmem:[%s1 + $0x18] sm:$0xf]
  %v22 = vld [vmem:[%s1 + $0x1c] sm:$0xf]
  %v23 = vld [vmem:[%s1 + $0x20] sm:$0xf]
  %v24 = vld [vmem:[%s1 + $0x24] sm:$0xf]
  %v25 = vld [vmem:[%s1 + $0x28] sm:$0xf]
  %v26 = vld [vmem:[%s1 + $0x2c] sm:$0xf]
  %v27 = vld [vmem:[%s2] sm:$0xff]
  %v28 = vld [vmem:[%s0] sm:$0xff]
  %v29 = vld [vmem:[%s0 + $0x8] sm:$0xff]
  %v30 = vlaneseq
  %v31 = vshrl.u32 %v30, 7
  %v32 = vsub.s32 0, %v31
  %v33 = vrot.slane %v27, %v32
  %35 = vset.pattern.permute.xlu0 0
  %36 = vperm.xlu0 %35, %v28
  %v37 = vpop.permute.xlu0 %36
  %40 = vset.pattern.permute.xlu0 0
  %41 = vperm.xlu0 %40, %v29
  %v42 = vpop.permute.xlu0 %41
  %v44 = vmul.f32 %v37, %v33
  %v45 = vmul.f32 %v42, %v33
  %v46 = vlaneseq
  %v47 = vshrl.u32 %v46, 7
  %v48 = vsub.s32 1, %v47
  %v49 = vrot.slane %v27, %v48
  %v50 = vadd.f32 %v44, %v49
  %v51 = vadd.f32 %v45, %v49
  %v52 = vlaneseq
  %v53 = vshrl.u32 %v52, 7
  %v54 = vsub.s32 2, %v53
  %v55 = vrot.slane %v27, %v54
  %v56 = vtanh.pop %v50
  %v57 = vpack.c.bf16 %v56, %v56
  %v62 = vunpack.c.l.b16 %v19
  %v63 = vunpack.c.l.b16 %v20
  %v64 = vunpack.c.l.b16 %v21
  %v65 = vunpack.c.l.b16 %v22
  %v66 = vpack.c.b16 %v63, %v62
  %v67 = vpack.c.b16 %v65, %v64
  %vm70 = vcmask 261120
  %v72 = vsel %vm70, %v57, 0
  %74 = vmatprep.subr.bf16.mxu0 0
  %75 = vmatpush1.bf16.msra.mxu0 %v66
  %76 = vmatprep.subr.bf16.mxu0 0
  %77 = vmatpush1.bf16.msra.mxu0 %v67
  %78 = vmatprep.subr.bf16.mxu0 0
  %79 = vmatpush1.bf16.msra.mxu0 0
  %80 = vmatprep.subr.bf16.mxu0 0
  %81 = vmatpush1.bf16.msra.mxu0 0
  %82 = vmatprep.subr.bf16.mxu0 0
  %83 = vmatpush1.bf16.msra.mxu0 0
  %84 = vmatprep.subr.bf16.mxu0 0
  %85 = vmatpush1.bf16.msra.mxu0 0
  %86 = vmatprep.subr.bf16.mxu0 0
  %87 = vmatpush1.bf16.msra.mxu0 0
  %88 = vmatprep.subr.bf16.mxu0 0
  %89 = vmatpush1.bf16.msra.mxu0 0
  %90 = vmatprep.subr.bf16.mxu0 0
  %91 = vmatpush1.bf16.msra.mxu0 0
  %92 = vmatprep.subr.bf16.mxu0 0
  %93 = vmatpush1.bf16.msra.mxu0 0
  %94 = vmatprep.subr.bf16.mxu0 0
  %95 = vmatpush1.bf16.msra.mxu0 0
  %96 = vmatprep.subr.bf16.mxu0 0
  %97 = vmatpush1.bf16.msra.mxu0 0
  %98 = vmatprep.subr.bf16.mxu0 0
  %99 = vmatpush1.bf16.msra.mxu0 0
  %100 = vmatprep.subr.bf16.mxu0 0
  %101 = vmatpush1.bf16.msra.mxu0 0
  %102 = vmatprep.subr.bf16.mxu0 0
  %103 = vmatpush1.bf16.msra.mxu0 0
  %104 = vmatprep.subr.bf16.mxu0 0
  %105 = vmatpush1.bf16.msra.mxu0 0
  %106 = vmatprep.mubr.bf16.mxu0 0
  %107 = vmatmul.mubr.bf16.gmra.mrb[0].mxu0 %v72
  %v108 = vpop.f32.mrb[0].mxu0
  %v109 = vadd.f32 %v55, %v108
  %v110 = vpop.f32.mrb[0].mxu0
  %v111 = vpop.f32.mrb[0].mxu0
  %v112 = vpop.f32.mrb[0].mxu0
  %113 = vdwg.mxu0
  %v114 = vtanh.pop %v109
  %v115 = vpack.c.bf16 %v114, %v114
  %v120 = vunpack.c.l.b16 %v23
  %v121 = vunpack.c.l.b16 %v24
  %v122 = vunpack.c.l.b16 %v25
  %v123 = vunpack.c.l.b16 %v26
  %v124 = vpack.c.b16 %v121, %v120
  %v125 = vpack.c.b16 %v123, %v122
  %v129 = vsel %vm70, %v115, 0
  %131 = vmatprep.subr.bf16.mxu0 0
  %132 = vmatpush1.bf16.msra.mxu0 %v124
  %133 = vmatprep.subr.bf16.mxu0 0
  %134 = vmatpush1.bf16.msra.mxu0 %v125
  %135 = vmatprep.subr.bf16.mxu0 0
  %136 = vmatpush1.bf16.msra.mxu0 0
  %137 = vmatprep.subr.bf16.mxu0 0
  %138 = vmatpush1.bf16.msra.mxu0 0
  %139 = vmatprep.subr.bf16.mxu0 0
  %140 = vmatpush1.bf16.msra.mxu0 0
  %141 = vmatprep.subr.bf16.mxu0 0
  %142 = vmatpush1.bf16.msra.mxu0 0
  %143 = vmatprep.subr.bf16.mxu0 0
  %144 = vmatpush1.bf16.msra.mxu0 0
  %145 = vmatprep.subr.bf16.mxu0 0
  %146 = vmatpush1.bf16.msra.mxu0 0
  %147 = vmatprep.subr.bf16.mxu0 0
  %148 = vmatpush1.bf16.msra.mxu0 0
  %149 = vmatprep.subr.bf16.mxu0 0
  %150 = vmatpush1.bf16.msra.mxu0 0
  %151 = vmatprep.subr.bf16.mxu0 0
  %152 = vmatpush1.bf16.msra.mxu0 0
  %153 = vmatprep.subr.bf16.mxu0 0
  %154 = vmatpush1.bf16.msra.mxu0 0
  %155 = vmatprep.subr.bf16.mxu0 0
  %156 = vmatpush1.bf16.msra.mxu0 0
  %157 = vmatprep.subr.bf16.mxu0 0
  %158 = vmatpush1.bf16.msra.mxu0 0
  %159 = vmatprep.subr.bf16.mxu0 0
  %160 = vmatpush1.bf16.msra.mxu0 0
  %161 = vmatprep.subr.bf16.mxu0 0
  %162 = vmatpush1.bf16.msra.mxu0 0
  %163 = vmatprep.mubr.bf16.mxu0 0
  %164 = vmatmul.mubr.bf16.gmra.mrb[0].mxu0 %v129
  %v165 = vpop.f32.mrb[0].mxu0
  %v166 = vadd.f32 0.0, %v165
  %v167 = vpop.f32.mrb[0].mxu0
  %v168 = vpop.f32.mrb[0].mxu0
  %v169 = vpop.f32.mrb[0].mxu0
  %170 = vdwg.mxu0
  %v175 = vunpack.c.l.b16 %v15
  %v176 = vunpack.c.l.b16 %v16
  %v177 = vunpack.c.l.b16 %v17
  %v178 = vunpack.c.l.b16 %v18
  %v179 = vpack.c.b16 %v176, %v175
  %v180 = vpack.c.b16 %v178, %v177
  %183 = vmatprep.subr.bf16.mxu0 0
  %184 = vmatpush1.bf16.msra.mxu0 %v179
  %185 = vmatprep.subr.bf16.mxu0 0
  %186 = vmatpush1.bf16.msra.mxu0 %v180
  %187 = vmatprep.subr.bf16.mxu0 0
  %188 = vmatpush1.bf16.msra.mxu0 0
  %189 = vmatprep.subr.bf16.mxu0 0
  %190 = vmatpush1.bf16.msra.mxu0 0
  %191 = vmatprep.subr.bf16.mxu0 0
  %192 = vmatpush1.bf16.msra.mxu0 0
  %193 = vmatprep.subr.bf16.mxu0 0
  %194 = vmatpush1.bf16.msra.mxu0 0
  %195 = vmatprep.subr.bf16.mxu0 0
  %196 = vmatpush1.bf16.msra.mxu0 0
  %197 = vmatprep.subr.bf16.mxu0 0
  %198 = vmatpush1.bf16.msra.mxu0 0
  %199 = vmatprep.subr.bf16.mxu0 0
  %200 = vmatpush1.bf16.msra.mxu0 0
  %201 = vmatprep.subr.bf16.mxu0 0
  %202 = vmatpush1.bf16.msra.mxu0 0
  %203 = vmatprep.subr.bf16.mxu0 0
  %204 = vmatpush1.bf16.msra.mxu0 0
  %205 = vmatprep.subr.bf16.mxu0 0
  %206 = vmatpush1.bf16.msra.mxu0 0
  %207 = vmatprep.subr.bf16.mxu0 0
  %208 = vmatpush1.bf16.msra.mxu0 0
  %209 = vmatprep.subr.bf16.mxu0 0
  %210 = vmatpush1.bf16.msra.mxu0 0
  %211 = vmatprep.subr.bf16.mxu0 0
  %212 = vmatpush1.bf16.msra.mxu0 0
  %213 = vmatprep.subr.bf16.mxu0 0
  %214 = vmatpush1.bf16.msra.mxu0 0
  %215 = vmatprep.mubr.bf16.mxu0 0
  %216 = vmatmul.mubr.bf16.gmra.mrb[0].mxu0 %v72
  %v217 = vpop.f32.mrb[0].mxu0
  %v218 = vadd.f32 0.0, %v217
  %v219 = vpop.f32.mrb[0].mxu0
  %v220 = vpop.f32.mrb[0].mxu0
  %v221 = vpop.f32.mrb[0].mxu0
  %222 = vdwg.mxu0
  %v224 = vrot.slane %v218, 6
  %v226 = vadd.f32 %v50, %v224
  %v227 = vtanh.pop %v226
  %v228 = vpack.c.bf16 %v227, %v227
  %v230 = vrot.slane %v228, 1
  %v232 = vsel %vm70, %v230, 0
  %234 = vmatprep.subr.bf16.mxu0 0
  %235 = vmatpush1.bf16.msra.mxu0 %v66
  %236 = vmatprep.subr.bf16.mxu0 0
  %237 = vmatpush1.bf16.msra.mxu0 %v67
  %238 = vmatprep.subr.bf16.mxu0 0
  %239 = vmatpush1.bf16.msra.mxu0 0
  %240 = vmatprep.subr.bf16.mxu0 0
  %241 = vmatpush1.bf16.msra.mxu0 0
  %242 = vmatprep.subr.bf16.mxu0 0
  %243 = vmatpush1.bf16.msra.mxu0 0
  %244 = vmatprep.subr.bf16.mxu0 0
  %245 = vmatpush1.bf16.msra.mxu0 0
  %246 = vmatprep.subr.bf16.mxu0 0
  %247 = vmatpush1.bf16.msra.mxu0 0
  %248 = vmatprep.subr.bf16.mxu0 0
  %249 = vmatpush1.bf16.msra.mxu0 0
  %250 = vmatprep.subr.bf16.mxu0 0
  %251 = vmatpush1.bf16.msra.mxu0 0
  %252 = vmatprep.subr.bf16.mxu0 0
  %253 = vmatpush1.bf16.msra.mxu0 0
  %254 = vmatprep.subr.bf16.mxu0 0
  %255 = vmatpush1.bf16.msra.mxu0 0
  %256 = vmatprep.subr.bf16.mxu0 0
  %257 = vmatpush1.bf16.msra.mxu0 0
  %258 = vmatprep.subr.bf16.mxu0 0
  %259 = vmatpush1.bf16.msra.mxu0 0
  %260 = vmatprep.subr.bf16.mxu0 0
  %261 = vmatpush1.bf16.msra.mxu0 0
  %262 = vmatprep.subr.bf16.mxu0 0
  %263 = vmatpush1.bf16.msra.mxu0 0
  %264 = vmatprep.subr.bf16.mxu0 0
  %265 = vmatpush1.bf16.msra.mxu0 0
  %266 = vmatprep.mubr.bf16.mxu0 0
  %267 = vmatmul.mubr.bf16.gmra.mrb[0].mxu0 %v232
  %v268 = vpop.f32.mrb[0].mxu0
  %v269 = vadd.f32 %v166, %v268
  %v270 = vpop.f32.mrb[0].mxu0
  %v271 = vpop.f32.mrb[0].mxu0
  %v272 = vpop.f32.mrb[0].mxu0
  %273 = vdwg.mxu0
  %v274 = vadd.f32 %v269, %v55
  %v275 = vtanh.pop %v274
  %v276 = vpack.c.bf16 %v275, %v275
  %v278 = vsel %vm70, %v276, 0
  %280 = vmatprep.subr.bf16.mxu0 0
  %281 = vmatpush1.bf16.msra.mxu0 %v124
  %282 = vmatprep.subr.bf16.mxu0 0
  %283 = vmatpush1.bf16.msra.mxu0 %v125
  %284 = vmatprep.subr.bf16.mxu0 0
  %285 = vmatpush1.bf16.msra.mxu0 0
  %286 = vmatprep.subr.bf16.mxu0 0
  %287 = vmatpush1.bf16.msra.mxu0 0
  %288 = vmatprep.subr.bf16.mxu0 0
  %289 = vmatpush1.bf16.msra.mxu0 0
  %290 = vmatprep.subr.bf16.mxu0 0
  %291 = vmatpush1.bf16.msra.mxu0 0
  %292 = vmatprep.subr.bf16.mxu0 0
  %293 = vmatpush1.bf16.msra.mxu0 0
  %294 = vmatprep.subr.bf16.mxu0 0
  %295 = vmatpush1.bf16.msra.mxu0 0
  %296 = vmatprep.subr.bf16.mxu0 0
  %297 = vmatpush1.bf16.msra.mxu0 0
  %298 = vmatprep.subr.bf16.mxu0 0
  %299 = vmatpush1.bf16.msra.mxu0 0
  %300 = vmatprep.subr.bf16.mxu0 0
  %301 = vmatpush1.bf16.msra.mxu0 0
  %302 = vmatprep.subr.bf16.mxu0 0
  %303 = vmatpush1.bf16.msra.mxu0 0
  %304 = vmatprep.subr.bf16.mxu0 0
  %305 = vmatpush1.bf16.msra.mxu0 0
  %306 = vmatprep.subr.bf16.mxu0 0
  %307 = vmatpush1.bf16.msra.mxu0 0
  %308 = vmatprep.subr.bf16.mxu0 0
  %309 = vmatpush1.bf16.msra.mxu0 0
  %310 = vmatprep.subr.bf16.mxu0 0
  %311 = vmatpush1.bf16.msra.mxu0 0
  %312 = vmatprep.mubr.bf16.mxu0 0
  %313 = vmatmul.mubr.bf16.gmra.mrb[0].mxu0 %v278
  %v314 = vpop.f32.mrb[0].mxu0
  %v315 = vadd.f32 0.0, %v314
  %v316 = vpop.f32.mrb[0].mxu0
  %v317 = vpop.f32.mrb[0].mxu0
  %v318 = vpop.f32.mrb[0].mxu0
  %319 = vdwg.mxu0
  %320 = vmatprep.subr.bf16.mxu0 0
  %321 = vmatpush1.bf16.msra.mxu0 %v179
  %322 = vmatprep.subr.bf16.mxu0 0
  %323 = vmatpush1.bf16.msra.mxu0 %v180
  %324 = vmatprep.subr.bf16.mxu0 0
  %325 = vmatpush1.bf16.msra.mxu0 0
  %326 = vmatprep.subr.bf16.mxu0 0
  %327 = vmatpush1.bf16.msra.mxu0 0
  %328 = vmatprep.subr.bf16.mxu0 0
  %329 = vmatpush1.bf16.msra.mxu0 0
  %330 = vmatprep.subr.bf16.mxu0 0
  %331 = vmatpush1.bf16.msra.mxu0 0
  %332 = vmatprep.subr.bf16.mxu0 0
  %333 = vmatpush1.bf16.msra.mxu0 0
  %334 = vmatprep.subr.bf16.mxu0 0
  %335 = vmatpush1.bf16.msra.mxu0 0
  %336 = vmatprep.subr.bf16.mxu0 0
  %337 = vmatpush1.bf16.msra.mxu0 0
  %338 = vmatprep.subr.bf16.mxu0 0
  %339 = vmatpush1.bf16.msra.mxu0 0
  %340 = vmatprep.subr.bf16.mxu0 0
  %341 = vmatpush1.bf16.msra.mxu0 0
  %342 = vmatprep.subr.bf16.mxu0 0
  %343 = vmatpush1.bf16.msra.mxu0 0
  %344 = vmatprep.subr.bf16.mxu0 0
  %345 = vmatpush1.bf16.msra.mxu0 0
  %346 = vmatprep.subr.bf16.mxu0 0
  %347 = vmatpush1.bf16.msra.mxu0 0
  %348 = vmatprep.subr.bf16.mxu0 0
  %349 = vmatpush1.bf16.msra.mxu0 0
  %350 = vmatprep.subr.bf16.mxu0 0
  %351 = vmatpush1.bf16.msra.mxu0 0
  %352 = vmatprep.mubr.bf16.mxu0 0
  %353 = vmatmul.mubr.bf16.gmra.mrb[0].mxu0 %v232
  %v354 = vpop.f32.mrb[0].mxu0
  %v355 = vadd.f32 0.0, %v354
  %v356 = vpop.f32.mrb[0].mxu0
  %v357 = vpop.f32.mrb[0].mxu0
  %v358 = vpop.f32.mrb[0].mxu0
  %359 = vdwg.mxu0
  %v361 = vrot.slane %v355, 4
  %v363 = vadd.f32 %v50, %v361
  %v364 = vtanh.pop %v363
  %v365 = vpack.c.bf16 %v364, %v364
  %v367 = vrot.slane %v365, 2
  %v369 = vsel %vm70, %v367, 0
  %371 = vmatprep.subr.bf16.mxu0 0
  %372 = vmatpush1.bf16.msra.mxu0 %v66
  %373 = vmatprep.subr.bf16.mxu0 0
  %374 = vmatpush1.bf16.msra.mxu0 %v67
  %375 = vmatprep.subr.bf16.mxu0 0
  %376 = vmatpush1.bf16.msra.mxu0 0
  %377 = vmatprep.subr.bf16.mxu0 0
  %378 = vmatpush1.bf16.msra.mxu0 0
  %379 = vmatprep.subr.bf16.mxu0 0
  %380 = vmatpush1.bf16.msra.mxu0 0
  %381 = vmatprep.subr.bf16.mxu0 0
  %382 = vmatpush1.bf16.msra.mxu0 0
  %383 = vmatprep.subr.bf16.mxu0 0
  %384 = vmatpush1.bf16.msra.mxu0 0
  %385 = vmatprep.subr.bf16.mxu0 0
  %386 = vmatpush1.bf16.msra.mxu0 0
  %387 = vmatprep.subr.bf16.mxu0 0
  %388 = vmatpush1.bf16.msra.mxu0 0
  %389 = vmatprep.subr.bf16.mxu0 0
  %390 = vmatpush1.bf16.msra.mxu0 0
  %391 = vmatprep.subr.bf16.mxu0 0
  %392 = vmatpush1.bf16.msra.mxu0 0
  %393 = vmatprep.subr.bf16.mxu0 0
  %394 = vmatpush1.bf16.msra.mxu0 0
  %395 = vmatprep.subr.bf16.mxu0 0
  %396 = vmatpush1.bf16.msra.mxu0 0
  %397 = vmatprep.subr.bf16.mxu0 0
  %398 = vmatpush1.bf16.msra.mxu0 0
  %399 = vmatprep.subr.bf16.mxu0 0
  %400 = vmatpush1.bf16.msra.mxu0 0
  %401 = vmatprep.subr.bf16.mxu0 0
  %402 = vmatpush1.bf16.msra.mxu0 0
  %403 = vmatprep.mubr.bf16.mxu0 0
  %404 = vmatmul.mubr.bf16.gmra.mrb[0].mxu0 %v369
  %v405 = vpop.f32.mrb[0].mxu0
  %v406 = vadd.f32 %v315, %v405
  %v407 = vpop.f32.mrb[0].mxu0
  %v408 = vpop.f32.mrb[0].mxu0
  %v409 = vpop.f32.mrb[0].mxu0
  %410 = vdwg.mxu0
  %v411 = vadd.f32 %v406, %v55
  %v412 = vtanh.pop %v411
  %v413 = vpack.c.bf16 %v412, %v412
  %v415 = vsel %vm70, %v413, 0
  %417 = vmatprep.subr.bf16.mxu0 0
  %418 = vmatpush1.bf16.msra.mxu0 %v124
  %419 = vmatprep.subr.bf16.mxu0 0
  %420 = vmatpush1.bf16.msra.mxu0 %v125
  %421 = vmatprep.subr.bf16.mxu0 0
  %422 = vmatpush1.bf16.msra.mxu0 0
  %423 = vmatprep.subr.bf16.mxu0 0
  %424 = vmatpush1.bf16.msra.mxu0 0
  %425 = vmatprep.subr.bf16.mxu0 0
  %426 = vmatpush1.bf16.msra.mxu0 0
  %427 = vmatprep.subr.bf16.mxu0 0
  %428 = vmatpush1.bf16.msra.mxu0 0
  %429 = vmatprep.subr.bf16.mxu0 0
  %430 = vmatpush1.bf16.msra.mxu0 0
  %431 = vmatprep.subr.bf16.mxu0 0
  %432 = vmatpush1.bf16.msra.mxu0 0
  %433 = vmatprep.subr.bf16.mxu0 0
  %434 = vmatpush1.bf16.msra.mxu0 0
  %435 = vmatprep.subr.bf16.mxu0 0
  %436 = vmatpush1.bf16.msra.mxu0 0
  %437 = vmatprep.subr.bf16.mxu0 0
  %438 = vmatpush1.bf16.msra.mxu0 0
  %439 = vmatprep.subr.bf16.mxu0 0
  %440 = vmatpush1.bf16.msra.mxu0 0
  %441 = vmatprep.subr.bf16.mxu0 0
  %442 = vmatpush1.bf16.msra.mxu0 0
  %443 = vmatprep.subr.bf16.mxu0 0
  %444 = vmatpush1.bf16.msra.mxu0 0
  %445 = vmatprep.subr.bf16.mxu0 0
  %446 = vmatpush1.bf16.msra.mxu0 0
  %447 = vmatprep.subr.bf16.mxu0 0
  %448 = vmatpush1.bf16.msra.mxu0 0
  %449 = vmatprep.mubr.bf16.mxu0 0
  %450 = vmatmul.mubr.bf16.gmra.mrb[0].mxu0 %v415
  %v451 = vpop.f32.mrb[0].mxu0
  %v452 = vadd.f32 0.0, %v451
  %v453 = vpop.f32.mrb[0].mxu0
  %v454 = vpop.f32.mrb[0].mxu0
  %v455 = vpop.f32.mrb[0].mxu0
  %456 = vdwg.mxu0
  %457 = vmatprep.subr.bf16.mxu0 0
  %458 = vmatpush1.bf16.msra.mxu0 %v179
  %459 = vmatprep.subr.bf16.mxu0 0
  %460 = vmatpush1.bf16.msra.mxu0 %v180
  %461 = vmatprep.subr.bf16.mxu0 0
  %462 = vmatpush1.bf16.msra.mxu0 0
  %463 = vmatprep.subr.bf16.mxu0 0
  %464 = vmatpush1.bf16.msra.mxu0 0
  %465 = vmatprep.subr.bf16.mxu0 0
  %466 = vmatpush1.bf16.msra.mxu0 0
  %467 = vmatprep.subr.bf16.mxu0 0
  %468 = vmatpush1.bf16.msra.mxu0 0
  %469 = vmatprep.subr.bf16.mxu0 0
  %470 = vmatpush1.bf16.msra.mxu0 0
  %471 = vmatprep.subr.bf16.mxu0 0
  %472 = vmatpush1.bf16.msra.mxu0 0
  %473 = vmatprep.subr.bf16.mxu0 0
  %474 = vmatpush1.bf16.msra.mxu0 0
  %475 = vmatprep.subr.bf16.mxu0 0
  %476 = vmatpush1.bf16.msra.mxu0 0
  %477 = vmatprep.subr.bf16.mxu0 0
  %478 = vmatpush1.bf16.msra.mxu0 0
  %479 = vmatprep.subr.bf16.mxu0 0
  %480 = vmatpush1.bf16.msra.mxu0 0
  %481 = vmatprep.subr.bf16.mxu0 0
  %482 = vmatpush1.bf16.msra.mxu0 0
  %483 = vmatprep.subr.bf16.mxu0 0
  %484 = vmatpush1.bf16.msra.mxu0 0
  %485 = vmatprep.subr.bf16.mxu0 0
  %486 = vmatpush1.bf16.msra.mxu0 0
  %487 = vmatprep.subr.bf16.mxu0 0
  %488 = vmatpush1.bf16.msra.mxu0 0
  %489 = vmatprep.mubr.bf16.mxu0 0
  %490 = vmatmul.mubr.bf16.gmra.mrb[0].mxu0 %v369
  %v491 = vpop.f32.mrb[0].mxu0
  %v492 = vadd.f32 0.0, %v491
  %v493 = vpop.f32.mrb[0].mxu0
  %v494 = vpop.f32.mrb[0].mxu0
  %v495 = vpop.f32.mrb[0].mxu0
  %496 = vdwg.mxu0
  %v498 = vrot.slane %v492, 2
  %v500 = vadd.f32 %v50, %v498
  %v501 = vtanh.pop %v500
  %v502 = vpack.c.bf16 %v501, %v501
  %v504 = vrot.slane %v502, 3
  %v506 = vsel %vm70, %v504, 0
  %508 = vmatprep.subr.bf16.mxu0 0
  %509 = vmatpush1.bf16.msra.mxu0 %v66
  %510 = vmatprep.subr.bf16.mxu0 0
  %511 = vmatpush1.bf16.msra.mxu0 %v67
  %512 = vmatprep.subr.bf16.mxu0 0
  %513 = vmatpush1.bf16.msra.mxu0 0
  %514 = vmatprep.subr.bf16.mxu0 0
  %515 = vmatpush1.bf16.msra.mxu0 0
  %516 = vmatprep.subr.bf16.mxu0 0
  %517 = vmatpush1.bf16.msra.mxu0 0
  %518 = vmatprep.subr.bf16.mxu0 0
  %519 = vmatpush1.bf16.msra.mxu0 0
  %520 = vmatprep.subr.bf16.mxu0 0
  %521 = vmatpush1.bf16.msra.mxu0 0
  %522 = vmatprep.subr.bf16.mxu0 0
  %523 = vmatpush1.bf16.msra.mxu0 0
  %524 = vmatprep.subr.bf16.mxu0 0
  %525 = vmatpush1.bf16.msra.mxu0 0
  %526 = vmatprep.subr.bf16.mxu0 0
  %527 = vmatpush1.bf16.msra.mxu0 0
  %528 = vmatprep.subr.bf16.mxu0 0
  %529 = vmatpush1.bf16.msra.mxu0 0
  %530 = vmatprep.subr.bf16.mxu0 0
  %531 = vmatpush1.bf16.msra.mxu0 0
  %532 = vmatprep.subr.bf16.mxu0 0
  %533 = vmatpush1.bf16.msra.mxu0 0
  %534 = vmatprep.subr.bf16.mxu0 0
  %535 = vmatpush1.bf16.msra.mxu0 0
  %536 = vmatprep.subr.bf16.mxu0 0
  %537 = vmatpush1.bf16.msra.mxu0 0
  %538 = vmatprep.subr.bf16.mxu0 0
  %539 = vmatpush1.bf16.msra.mxu0 0
  %540 = vmatprep.mubr.bf16.mxu0 0
  %541 = vmatmul.mubr.bf16.gmra.mrb[0].mxu0 %v506
  %v542 = vpop.f32.mrb[0].mxu0
  %v543 = vadd.f32 %v452, %v542
  %v544 = vpop.f32.mrb[0].mxu0
  %v545 = vpop.f32.mrb[0].mxu0
  %v546 = vpop.f32.mrb[0].mxu0
  %547 = vdwg.mxu0
  %v548 = vadd.f32 %v543, %v55
  %v549 = vtanh.pop %v548
  %v550 = vpack.c.bf16 %v549, %v549
  %v552 = vsel %vm70, %v550, 0
  %554 = vmatprep.subr.bf16.mxu0 0
  %555 = vmatpush1.bf16.msra.mxu0 %v124
  %556 = vmatprep.subr.bf16.mxu0 0
  %557 = vmatpush1.bf16.msra.mxu0 %v125
  %558 = vmatprep.subr.bf16.mxu0 0
  %559 = vmatpush1.bf16.msra.mxu0 0
  %560 = vmatprep.subr.bf16.mxu0 0
  %561 = vmatpush1.bf16.msra.mxu0 0
  %562 = vmatprep.subr.bf16.mxu0 0
  %563 = vmatpush1.bf16.msra.mxu0 0
  %564 = vmatprep.subr.bf16.mxu0 0
  %565 = vmatpush1.bf16.msra.mxu0 0
  %566 = vmatprep.subr.bf16.mxu0 0
  %567 = vmatpush1.bf16.msra.mxu0 0
  %568 = vmatprep.subr.bf16.mxu0 0
  %569 = vmatpush1.bf16.msra.mxu0 0
  %570 = vmatprep.subr.bf16.mxu0 0
  %571 = vmatpush1.bf16.msra.mxu0 0
  %572 = vmatprep.subr.bf16.mxu0 0
  %573 = vmatpush1.bf16.msra.mxu0 0
  %574 = vmatprep.subr.bf16.mxu0 0
  %575 = vmatpush1.bf16.msra.mxu0 0
  %576 = vmatprep.subr.bf16.mxu0 0
  %577 = vmatpush1.bf16.msra.mxu0 0
  %578 = vmatprep.subr.bf16.mxu0 0
  %579 = vmatpush1.bf16.msra.mxu0 0
  %580 = vmatprep.subr.bf16.mxu0 0
  %581 = vmatpush1.bf16.msra.mxu0 0
  %582 = vmatprep.subr.bf16.mxu0 0
  %583 = vmatpush1.bf16.msra.mxu0 0
  %584 = vmatprep.subr.bf16.mxu0 0
  %585 = vmatpush1.bf16.msra.mxu0 0
  %586 = vmatprep.mubr.bf16.mxu0 0
  %587 = vmatmul.mubr.bf16.gmra.mrb[0].mxu0 %v552
  %v588 = vpop.f32.mrb[0].mxu0
  %v589 = vadd.f32 0.0, %v588
  %v590 = vpop.f32.mrb[0].mxu0
  %v591 = vpop.f32.mrb[0].mxu0
  %v592 = vpop.f32.mrb[0].mxu0
  %593 = vdwg.mxu0
  %594 = vmatprep.subr.bf16.mxu0 0
  %595 = vmatpush1.bf16.msra.mxu0 %v179
  %596 = vmatprep.subr.bf16.mxu0 0
  %597 = vmatpush1.bf16.msra.mxu0 %v180
  %598 = vmatprep.subr.bf16.mxu0 0
  %599 = vmatpush1.bf16.msra.mxu0 0
  %600 = vmatprep.subr.bf16.mxu0 0
  %601 = vmatpush1.bf16.msra.mxu0 0
  %602 = vmatprep.subr.bf16.mxu0 0
  %603 = vmatpush1.bf16.msra.mxu0 0
  %604 = vmatprep.subr.bf16.mxu0 0
  %605 = vmatpush1.bf16.msra.mxu0 0
  %606 = vmatprep.subr.bf16.mxu0 0
  %607 = vmatpush1.bf16.msra.mxu0 0
  %608 = vmatprep.subr.bf16.mxu0 0
  %609 = vmatpush1.bf16.msra.mxu0 0
  %610 = vmatprep.subr.bf16.mxu0 0
  %611 = vmatpush1.bf16.msra.mxu0 0
  %612 = vmatprep.subr.bf16.mxu0 0
  %613 = vmatpush1.bf16.msra.mxu0 0
  %614 = vmatprep.subr.bf16.mxu0 0
  %615 = vmatpush1.bf16.msra.mxu0 0
  %616 = vmatprep.subr.bf16.mxu0 0
  %617 = vmatpush1.bf16.msra.mxu0 0
  %618 = vmatprep.subr.bf16.mxu0 0
  %619 = vmatpush1.bf16.msra.mxu0 0
  %620 = vmatprep.subr.bf16.mxu0 0
  %621 = vmatpush1.bf16.msra.mxu0 0
  %622 = vmatprep.subr.bf16.mxu0 0
  %623 = vmatpush1.bf16.msra.mxu0 0
  %624 = vmatprep.subr.bf16.mxu0 0
  %625 = vmatpush1.bf16.msra.mxu0 0
  %626 = vmatprep.mubr.bf16.mxu0 0
  %627 = vmatmul.mubr.bf16.gmra.mrb[0].mxu0 %v506
  %v628 = vpop.f32.mrb[0].mxu0
  %v629 = vadd.f32 0.0, %v628
  %v630 = vpop.f32.mrb[0].mxu0
  %v631 = vpop.f32.mrb[0].mxu0
  %v632 = vpop.f32.mrb[0].mxu0
  %633 = vdwg.mxu0
  %v634 = vadd.f32 %v51, %v629
  %v635 = vtanh.pop %v634
  %v636 = vpack.c.bf16 %v635, %v635
  %v638 = vsel %vm70, %v636, 0
  %640 = vmatprep.subr.bf16.mxu0 0
  %641 = vmatpush1.bf16.msra.mxu0 %v66
  %642 = vmatprep.subr.bf16.mxu0 0
  %643 = vmatpush1.bf16.msra.mxu0 %v67
  %644 = vmatprep.subr.bf16.mxu0 0
  %645 = vmatpush1.bf16.msra.mxu0 0
  %646 = vmatprep.subr.bf16.mxu0 0
  %647 = vmatpush1.bf16.msra.mxu0 0
  %648 = vmatprep.subr.bf16.mxu0 0
  %649 = vmatpush1.bf16.msra.mxu0 0
  %650 = vmatprep.subr.bf16.mxu0 0
  %651 = vmatpush1.bf16.msra.mxu0 0
  %652 = vmatprep.subr.bf16.mxu0 0
  %653 = vmatpush1.bf16.msra.mxu0 0
  %654 = vmatprep.subr.bf16.mxu0 0
  %655 = vmatpush1.bf16.msra.mxu0 0
  %656 = vmatprep.subr.bf16.mxu0 0
  %657 = vmatpush1.bf16.msra.mxu0 0
  %658 = vmatprep.subr.bf16.mxu0 0
  %659 = vmatpush1.bf16.msra.mxu0 0
  %660 = vmatprep.subr.bf16.mxu0 0
  %661 = vmatpush1.bf16.msra.mxu0 0
  %662 = vmatprep.subr.bf16.mxu0 0
  %663 = vmatpush1.bf16.msra.mxu0 0
  %664 = vmatprep.subr.bf16.mxu0 0
  %665 = vmatpush1.bf16.msra.mxu0 0
  %666 = vmatprep.subr.bf16.mxu0 0
  %667 = vmatpush1.bf16.msra.mxu0 0
  %668 = vmatprep.subr.bf16.mxu0 0
  %669 = vmatpush1.bf16.msra.mxu0 0
  %670 = vmatprep.subr.bf16.mxu0 0
  %671 = vmatpush1.bf16.msra.mxu0 0
  %672 = vmatprep.mubr.bf16.mxu0 0
  %673 = vmatmul.mubr.bf16.gmra.mrb[0].mxu0 %v638
  %v674 = vpop.f32.mrb[0].mxu0
  %v675 = vadd.f32 %v589, %v674
  %v676 = vpop.f32.mrb[0].mxu0
  %v677 = vpop.f32.mrb[0].mxu0
  %v678 = vpop.f32.mrb[0].mxu0
  %679 = vdwg.mxu0
  %v680 = vadd.f32 %v675, %v55
  %v681 = vtanh.pop %v680
  %v682 = vpack.c.bf16 %v681, %v681
  %v684 = vsel %vm70, %v682, 0
  %686 = vmatprep.subr.bf16.mxu0 0
  %687 = vmatpush1.bf16.msra.mxu0 %v124
  %688 = vmatprep.subr.bf16.mxu0 0
  %689 = vmatpush1.bf16.msra.mxu0 %v125
  %690 = vmatprep.subr.bf16.mxu0 0
  %691 = vmatpush1.bf16.msra.mxu0 0
  %692 = vmatprep.subr.bf16.mxu0 0
  %693 = vmatpush1.bf16.msra.mxu0 0
  %694 = vmatprep.subr.bf16.mxu0 0
  %695 = vmatpush1.bf16.msra.mxu0 0
  %696 = vmatprep.subr.bf16.mxu0 0
  %697 = vmatpush1.bf16.msra.mxu0 0
  %698 = vmatprep.subr.bf16.mxu0 0
  %699 = vmatpush1.bf16.msra.mxu0 0
  %700 = vmatprep.subr.bf16.mxu0 0
  %701 = vmatpush1.bf16.msra.mxu0 0
  %702 = vmatprep.subr.bf16.mxu0 0
  %703 = vmatpush1.bf16.msra.mxu0 0
  %704 = vmatprep.subr.bf16.mxu0 0
  %705 = vmatpush1.bf16.msra.mxu0 0
  %706 = vmatprep.subr.bf16.mxu0 0
  %707 = vmatpush1.bf16.msra.mxu0 0
  %708 = vmatprep.subr.bf16.mxu0 0
  %709 = vmatpush1.bf16.msra.mxu0 0
  %710 = vmatprep.subr.bf16.mxu0 0
  %711 = vmatpush1.bf16.msra.mxu0 0
  %712 = vmatprep.subr.bf16.mxu0 0
  %713 = vmatpush1.bf16.msra.mxu0 0
  %714 = vmatprep.subr.bf16.mxu0 0
  %715 = vmatpush1.bf16.msra.mxu0 0
  %716 = vmatprep.subr.bf16.mxu0 0
  %717 = vmatpush1.bf16.msra.mxu0 0
  %718 = vmatprep.mubr.bf16.mxu0 0
  %719 = vmatmul.mubr.bf16.gmra.mrb[0].mxu0 %v684
  %v720 = vpop.f32.mrb[0].mxu0
  %v721 = vadd.f32 0.0, %v720
  %v722 = vpop.f32.mrb[0].mxu0
  %v723 = vpop.f32.mrb[0].mxu0
  %v724 = vpop.f32.mrb[0].mxu0
  %725 = vdwg.mxu0
  %726 = vmatprep.subr.bf16.mxu0 0
  %727 = vmatpush1.bf16.msra.mxu0 %v179
  %728 = vmatprep.subr.bf16.mxu0 0
  %729 = vmatpush1.bf16.msra.mxu0 %v180
  %730 = vmatprep.subr.bf16.mxu0 0
  %731 = vmatpush1.bf16.msra.mxu0 0
  %732 = vmatprep.subr.bf16.mxu0 0
  %733 = vmatpush1.bf16.msra.mxu0 0
  %734 = vmatprep.subr.bf16.mxu0 0
  %735 = vmatpush1.bf16.msra.mxu0 0
  %736 = vmatprep.subr.bf16.mxu0 0
  %737 = vmatpush1.bf16.msra.mxu0 0
  %738 = vmatprep.subr.bf16.mxu0 0
  %739 = vmatpush1.bf16.msra.mxu0 0
  %740 = vmatprep.subr.bf16.mxu0 0
  %741 = vmatpush1.bf16.msra.mxu0 0
  %742 = vmatprep.subr.bf16.mxu0 0
  %743 = vmatpush1.bf16.msra.mxu0 0
  %744 = vmatprep.subr.bf16.mxu0 0
  %745 = vmatpush1.bf16.msra.mxu0 0
  %746 = vmatprep.subr.bf16.mxu0 0
  %747 = vmatpush1.bf16.msra.mxu0 0
  %748 = vmatprep.subr.bf16.mxu0 0
  %749 = vmatpush1.bf16.msra.mxu0 0
  %750 = vmatprep.subr.bf16.mxu0 0
  %751 = vmatpush1.bf16.msra.mxu0 0
  %752 = vmatprep.subr.bf16.mxu0 0
  %753 = vmatpush1.bf16.msra.mxu0 0
  %754 = vmatprep.subr.bf16.mxu0 0
  %755 = vmatpush1.bf16.msra.mxu0 0
  %756 = vmatprep.subr.bf16.mxu0 0
  %757 = vmatpush1.bf16.msra.mxu0 0
  %758 = vmatprep.mubr.bf16.mxu0 0
  %759 = vmatmul.mubr.bf16.gmra.mrb[0].mxu0 %v638
  %v760 = vpop.f32.mrb[0].mxu0
  %v761 = vadd.f32 0.0, %v760
  %v762 = vpop.f32.mrb[0].mxu0
  %v763 = vpop.f32.mrb[0].mxu0
  %v764 = vpop.f32.mrb[0].mxu0
  %765 = vdwg.mxu0
  %v767 = vrot.slane %v761, 6
  %v769 = vadd.f32 %v51, %v767
  %v770 = vtanh.pop %v769
  %v771 = vpack.c.bf16 %v770, %v770
  %v773 = vrot.slane %v771, 1
  %v775 = vsel %vm70, %v773, 0
  %777 = vmatprep.subr.bf16.mxu0 0
  %778 = vmatpush1.bf16.msra.mxu0 %v66
  %779 = vmatprep.subr.bf16.mxu0 0
  %780 = vmatpush1.bf16.msra.mxu0 %v67
  %781 = vmatprep.subr.bf16.mxu0 0
  %782 = vmatpush1.bf16.msra.mxu0 0
  %783 = vmatprep.subr.bf16.mxu0 0
  %784 = vmatpush1.bf16.msra.mxu0 0
  %785 = vmatprep.subr.bf16.mxu0 0
  %786 = vmatpush1.bf16.msra.mxu0 0
  %787 = vmatprep.subr.bf16.mxu0 0
  %788 = vmatpush1.bf16.msra.mxu0 0
  %789 = vmatprep.subr.bf16.mxu0 0
  %790 = vmatpush1.bf16.msra.mxu0 0
  %791 = vmatprep.subr.bf16.mxu0 0
  %792 = vmatpush1.bf16.msra.mxu0 0
  %793 = vmatprep.subr.bf16.mxu0 0
  %794 = vmatpush1.bf16.msra.mxu0 0
  %795 = vmatprep.subr.bf16.mxu0 0
  %796 = vmatpush1.bf16.msra.mxu0 0
  %797 = vmatprep.subr.bf16.mxu0 0
  %798 = vmatpush1.bf16.msra.mxu0 0
  %799 = vmatprep.subr.bf16.mxu0 0
  %800 = vmatpush1.bf16.msra.mxu0 0
  %801 = vmatprep.subr.bf16.mxu0 0
  %802 = vmatpush1.bf16.msra.mxu0 0
  %803 = vmatprep.subr.bf16.mxu0 0
  %804 = vmatpush1.bf16.msra.mxu0 0
  %805 = vmatprep.subr.bf16.mxu0 0
  %806 = vmatpush1.bf16.msra.mxu0 0
  %807 = vmatprep.subr.bf16.mxu0 0
  %808 = vmatpush1.bf16.msra.mxu0 0
  %809 = vmatprep.mubr.bf16.mxu0 0
  %810 = vmatmul.mubr.bf16.gmra.mrb[0].mxu0 %v775
  %v811 = vpop.f32.mrb[0].mxu0
  %v812 = vadd.f32 %v721, %v811
  %v813 = vpop.f32.mrb[0].mxu0
  %v814 = vpop.f32.mrb[0].mxu0
  %v815 = vpop.f32.mrb[0].mxu0
  %816 = vdwg.mxu0
  %v817 = vadd.f32 %v812, %v55
  %v818 = vtanh.pop %v817
  %v819 = vpack.c.bf16 %v818, %v818
  %v821 = vsel %vm70, %v819, 0
  %823 = vmatprep.subr.bf16.mxu0 0
  %824 = vmatpush1.bf16.msra.mxu0 %v124
  %825 = vmatprep.subr.bf16.mxu0 0
  %826 = vmatpush1.bf16.msra.mxu0 %v125
  %827 = vmatprep.subr.bf16.mxu0 0
  %828 = vmatpush1.bf16.msra.mxu0 0
  %829 = vmatprep.subr.bf16.mxu0 0
  %830 = vmatpush1.bf16.msra.mxu0 0
  %831 = vmatprep.subr.bf16.mxu0 0
  %832 = vmatpush1.bf16.msra.mxu0 0
  %833 = vmatprep.subr.bf16.mxu0 0
  %834 = vmatpush1.bf16.msra.mxu0 0
  %835 = vmatprep.subr.bf16.mxu0 0
  %836 = vmatpush1.bf16.msra.mxu0 0
  %837 = vmatprep.subr.bf16.mxu0 0
  %838 = vmatpush1.bf16.msra.mxu0 0
  %839 = vmatprep.subr.bf16.mxu0 0
  %840 = vmatpush1.bf16.msra.mxu0 0
  %841 = vmatprep.subr.bf16.mxu0 0
  %842 = vmatpush1.bf16.msra.mxu0 0
  %843 = vmatprep.subr.bf16.mxu0 0
  %844 = vmatpush1.bf16.msra.mxu0 0
  %845 = vmatprep.subr.bf16.mxu0 0
  %846 = vmatpush1.bf16.msra.mxu0 0
  %847 = vmatprep.subr.bf16.mxu0 0
  %848 = vmatpush1.bf16.msra.mxu0 0
  %849 = vmatprep.subr.bf16.mxu0 0
  %850 = vmatpush1.bf16.msra.mxu0 0
  %851 = vmatprep.subr.bf16.mxu0 0
  %852 = vmatpush1.bf16.msra.mxu0 0
  %853 = vmatprep.subr.bf16.mxu0 0
  %854 = vmatpush1.bf16.msra.mxu0 0
  %855 = vmatprep.mubr.bf16.mxu0 0
  %856 = vmatmul.mubr.bf16.gmra.mrb[0].mxu0 %v821
  %v857 = vpop.f32.mrb[0].mxu0
  %v858 = vadd.f32 0.0, %v857
  %v859 = vpop.f32.mrb[0].mxu0
  %v860 = vpop.f32.mrb[0].mxu0
  %v861 = vpop.f32.mrb[0].mxu0
  %862 = vdwg.mxu0
  %863 = vmatprep.subr.bf16.mxu0 0
  %864 = vmatpush1.bf16.msra.mxu0 %v179
  %865 = vmatprep.subr.bf16.mxu0 0
  %866 = vmatpush1.bf16.msra.mxu0 %v180
  %867 = vmatprep.subr.bf16.mxu0 0
  %868 = vmatpush1.bf16.msra.mxu0 0
  %869 = vmatprep.subr.bf16.mxu0 0
  %870 = vmatpush1.bf16.msra.mxu0 0
  %871 = vmatprep.subr.bf16.mxu0 0
  %872 = vmatpush1.bf16.msra.mxu0 0
  %873 = vmatprep.subr.bf16.mxu0 0
  %874 = vmatpush1.bf16.msra.mxu0 0
  %875 = vmatprep.subr.bf16.mxu0 0
  %876 = vmatpush1.bf16.msra.mxu0 0
  %877 = vmatprep.subr.bf16.mxu0 0
  %878 = vmatpush1.bf16.msra.mxu0 0
  %879 = vmatprep.subr.bf16.mxu0 0
  %880 = vmatpush1.bf16.msra.mxu0 0
  %881 = vmatprep.subr.bf16.mxu0 0
  %882 = vmatpush1.bf16.msra.mxu0 0
  %883 = vmatprep.subr.bf16.mxu0 0
  %884 = vmatpush1.bf16.msra.mxu0 0
  %885 = vmatprep.subr.bf16.mxu0 0
  %886 = vmatpush1.bf16.msra.mxu0 0
  %887 = vmatprep.subr.bf16.mxu0 0
  %888 = vmatpush1.bf16.msra.mxu0 0
  %889 = vmatprep.subr.bf16.mxu0 0
  %890 = vmatpush1.bf16.msra.mxu0 0
  %891 = vmatprep.subr.bf16.mxu0 0
  %892 = vmatpush1.bf16.msra.mxu0 0
  %893 = vmatprep.subr.bf16.mxu0 0
  %894 = vmatpush1.bf16.msra.mxu0 0
  %895 = vmatprep.mubr.bf16.mxu0 0
  %896 = vmatmul.mubr.bf16.gmra.mrb[0].mxu0 %v775
  %v897 = vpop.f32.mrb[0].mxu0
  %v898 = vadd.f32 0.0, %v897
  %v899 = vpop.f32.mrb[0].mxu0
  %v900 = vpop.f32.mrb[0].mxu0
  %v901 = vpop.f32.mrb[0].mxu0
  %902 = vdwg.mxu0
  %v904 = vrot.slane %v898, 4
  %v906 = vadd.f32 %v51, %v904
  %v907 = vtanh.pop %v906
  %v908 = vpack.c.bf16 %v907, %v907
  %v910 = vrot.slane %v908, 2
  %v912 = vsel %vm70, %v910, 0
  %914 = vmatprep.subr.bf16.mxu0 0
  %915 = vmatpush1.bf16.msra.mxu0 %v66
  %916 = vmatprep.subr.bf16.mxu0 0
  %917 = vmatpush1.bf16.msra.mxu0 %v67
  %918 = vmatprep.subr.bf16.mxu0 0
  %919 = vmatpush1.bf16.msra.mxu0 0
  %920 = vmatprep.subr.bf16.mxu0 0
  %921 = vmatpush1.bf16.msra.mxu0 0
  %922 = vmatprep.subr.bf16.mxu0 0
  %923 = vmatpush1.bf16.msra.mxu0 0
  %924 = vmatprep.subr.bf16.mxu0 0
  %925 = vmatpush1.bf16.msra.mxu0 0
  %926 = vmatprep.subr.bf16.mxu0 0
  %927 = vmatpush1.bf16.msra.mxu0 0
  %928 = vmatprep.subr.bf16.mxu0 0
  %929 = vmatpush1.bf16.msra.mxu0 0
  %930 = vmatprep.subr.bf16.mxu0 0
  %931 = vmatpush1.bf16.msra.mxu0 0
  %932 = vmatprep.subr.bf16.mxu0 0
  %933 = vmatpush1.bf16.msra.mxu0 0
  %934 = vmatprep.subr.bf16.mxu0 0
  %935 = vmatpush1.bf16.msra.mxu0 0
  %936 = vmatprep.subr.bf16.mxu0 0
  %937 = vmatpush1.bf16.msra.mxu0 0
  %938 = vmatprep.subr.bf16.mxu0 0
  %939 = vmatpush1.bf16.msra.mxu0 0
  %940 = vmatprep.subr.bf16.mxu0 0
  %941 = vmatpush1.bf16.msra.mxu0 0
  %942 = vmatprep.subr.bf16.mxu0 0
  %943 = vmatpush1.bf16.msra.mxu0 0
  %944 = vmatprep.subr.bf16.mxu0 0
  %945 = vmatpush1.bf16.msra.mxu0 0
  %946 = vmatprep.mubr.bf16.mxu0 0
  %947 = vmatmul.mubr.bf16.gmra.mrb[0].mxu0 %v912
  %v948 = vpop.f32.mrb[0].mxu0
  %v949 = vadd.f32 %v858, %v948
  %v950 = vpop.f32.mrb[0].mxu0
  %v951 = vpop.f32.mrb[0].mxu0
  %v952 = vpop.f32.mrb[0].mxu0
  %953 = vdwg.mxu0
  %v954 = vadd.f32 %v949, %v55
  %v955 = vtanh.pop %v954
  %v956 = vpack.c.bf16 %v955, %v955
  %v958 = vsel %vm70, %v956, 0
  %960 = vmatprep.subr.bf16.mxu0 0
  %961 = vmatpush1.bf16.msra.mxu0 %v124
  %962 = vmatprep.subr.bf16.mxu0 0
  %963 = vmatpush1.bf16.msra.mxu0 %v125
  %964 = vmatprep.subr.bf16.mxu0 0
  %965 = vmatpush1.bf16.msra.mxu0 0
  %966 = vmatprep.subr.bf16.mxu0 0
  %967 = vmatpush1.bf16.msra.mxu0 0
  %968 = vmatprep.subr.bf16.mxu0 0
  %969 = vmatpush1.bf16.msra.mxu0 0
  %970 = vmatprep.subr.bf16.mxu0 0
  %971 = vmatpush1.bf16.msra.mxu0 0
  %972 = vmatprep.subr.bf16.mxu0 0
  %973 = vmatpush1.bf16.msra.mxu0 0
  %974 = vmatprep.subr.bf16.mxu0 0
  %975 = vmatpush1.bf16.msra.mxu0 0
  %976 = vmatprep.subr.bf16.mxu0 0
  %977 = vmatpush1.bf16.msra.mxu0 0
  %978 = vmatprep.subr.bf16.mxu0 0
  %979 = vmatpush1.bf16.msra.mxu0 0
  %980 = vmatprep.subr.bf16.mxu0 0
  %981 = vmatpush1.bf16.msra.mxu0 0
  %982 = vmatprep.subr.bf16.mxu0 0
  %983 = vmatpush1.bf16.msra.mxu0 0
  %984 = vmatprep.subr.bf16.mxu0 0
  %985 = vmatpush1.bf16.msra.mxu0 0
  %986 = vmatprep.subr.bf16.mxu0 0
  %987 = vmatpush1.bf16.msra.mxu0 0
  %988 = vmatprep.subr.bf16.mxu0 0
  %989 = vmatpush1.bf16.msra.mxu0 0
  %990 = vmatprep.subr.bf16.mxu0 0
  %991 = vmatpush1.bf16.msra.mxu0 0
  %992 = vmatprep.mubr.bf16.mxu0 0
  %993 = vmatmul.mubr.bf16.gmra.mrb[0].mxu0 %v958
  %v994 = vpop.f32.mrb[0].mxu0
  %v995 = vadd.f32 0.0, %v994
  %v996 = vpop.f32.mrb[0].mxu0
  %v997 = vpop.f32.mrb[0].mxu0
  %v998 = vpop.f32.mrb[0].mxu0
  %999 = vdwg.mxu0
  %1000 = vmatprep.subr.bf16.mxu0 0
  %1001 = vmatpush1.bf16.msra.mxu0 %v179
  %1002 = vmatprep.subr.bf16.mxu0 0
  %1003 = vmatpush1.bf16.msra.mxu0 %v180
  %1004 = vmatprep.subr.bf16.mxu0 0
  %1005 = vmatpush1.bf16.msra.mxu0 0
  %1006 = vmatprep.subr.bf16.mxu0 0
  %1007 = vmatpush1.bf16.msra.mxu0 0
  %1008 = vmatprep.subr.bf16.mxu0 0
  %1009 = vmatpush1.bf16.msra.mxu0 0
  %1010 = vmatprep.subr.bf16.mxu0 0
  %1011 = vmatpush1.bf16.msra.mxu0 0
  %1012 = vmatprep.subr.bf16.mxu0 0
  %1013 = vmatpush1.bf16.msra.mxu0 0
  %1014 = vmatprep.subr.bf16.mxu0 0
  %1015 = vmatpush1.bf16.msra.mxu0 0
  %1016 = vmatprep.subr.bf16.mxu0 0
  %1017 = vmatpush1.bf16.msra.mxu0 0
  %1018 = vmatprep.subr.bf16.mxu0 0
  %1019 = vmatpush1.bf16.msra.mxu0 0
  %1020 = vmatprep.subr.bf16.mxu0 0
  %1021 = vmatpush1.bf16.msra.mxu0 0
  %1022 = vmatprep.subr.bf16.mxu0 0
  %1023 = vmatpush1.bf16.msra.mxu0 0
  %1024 = vmatprep.subr.bf16.mxu0 0
  %1025 = vmatpush1.bf16.msra.mxu0 0
  %1026 = vmatprep.subr.bf16.mxu0 0
  %1027 = vmatpush1.bf16.msra.mxu0 0
  %1028 = vmatprep.subr.bf16.mxu0 0
  %1029 = vmatpush1.bf16.msra.mxu0 0
  %1030 = vmatprep.subr.bf16.mxu0 0
  %1031 = vmatpush1.bf16.msra.mxu0 0
  %1032 = vmatprep.mubr.bf16.mxu0 0
  %1033 = vmatmul.mubr.bf16.gmra.mrb[0].mxu0 %v912
  %v1034 = vpop.f32.mrb[0].mxu0
  %v1035 = vadd.f32 0.0, %v1034
  %v1036 = vpop.f32.mrb[0].mxu0
  %v1037 = vpop.f32.mrb[0].mxu0
  %v1038 = vpop.f32.mrb[0].mxu0
  %1039 = vdwg.mxu0
  %v1041 = vrot.slane %v1035, 2
  %v1043 = vadd.f32 %v51, %v1041
  %v1044 = vtanh.pop %v1043
  %v1045 = vpack.c.bf16 %v1044, %v1044
  %v1047 = vrot.slane %v1045, 3
  %v1049 = vsel %vm70, %v1047, 0
  %1051 = vmatprep.subr.bf16.mxu0 0
  %1052 = vmatpush1.bf16.msra.mxu0 %v66
  %1053 = vmatprep.subr.bf16.mxu0 0
  %1054 = vmatpush1.bf16.msra.mxu0 %v67
  %1055 = vmatprep.subr.bf16.mxu0 0
  %1056 = vmatpush1.bf16.msra.mxu0 0
  %1057 = vmatprep.subr.bf16.mxu0 0
  %1058 = vmatpush1.bf16.msra.mxu0 0
  %1059 = vmatprep.subr.bf16.mxu0 0
  %1060 = vmatpush1.bf16.msra.mxu0 0
  %1061 = vmatprep.subr.bf16.mxu0 0
  %1062 = vmatpush1.bf16.msra.mxu0 0
  %1063 = vmatprep.subr.bf16.mxu0 0
  %1064 = vmatpush1.bf16.msra.mxu0 0
  %1065 = vmatprep.subr.bf16.mxu0 0
  %1066 = vmatpush1.bf16.msra.mxu0 0
  %1067 = vmatprep.subr.bf16.mxu0 0
  %1068 = vmatpush1.bf16.msra.mxu0 0
  %1069 = vmatprep.subr.bf16.mxu0 0
  %1070 = vmatpush1.bf16.msra.mxu0 0
  %1071 = vmatprep.subr.bf16.mxu0 0
  %1072 = vmatpush1.bf16.msra.mxu0 0
  %1073 = vmatprep.subr.bf16.mxu0 0
  %1074 = vmatpush1.bf16.msra.mxu0 0
  %1075 = vmatprep.subr.bf16.mxu0 0
  %1076 = vmatpush1.bf16.msra.mxu0 0
  %1077 = vmatprep.subr.bf16.mxu0 0
  %1078 = vmatpush1.bf16.msra.mxu0 0
  %1079 = vmatprep.subr.bf16.mxu0 0
  %1080 = vmatpush1.bf16.msra.mxu0 0
  %1081 = vmatprep.subr.bf16.mxu0 0
  %1082 = vmatpush1.bf16.msra.mxu0 0
  %1083 = vmatprep.mubr.bf16.mxu0 0
  %1084 = vmatmul.mubr.bf16.gmra.mrb[0].mxu0 %v1049
  %v1085 = vpop.f32.mrb[0].mxu0
  %v1086 = vadd.f32 %v995, %v1085
  %v1087 = vpop.f32.mrb[0].mxu0
  %v1088 = vpop.f32.mrb[0].mxu0
  %v1089 = vpop.f32.mrb[0].mxu0
  %1090 = vdwg.mxu0
  %v1091 = vadd.f32 %v1086, %v55
  %v1092 = vtanh.pop %v1091
  %v1093 = vlaneseq
  %v1094 = vshrl.u32 %v1093, 7
  %v1095 = vsub.s32 3, %v1094
  %v1096 = vrot.slane %v27, %v1095
  %v1097 = vmul.f32 %v1092, %v1096
  %vm1098 = vcmask 254976
  %v1099 = vsel %vm1098, %v1097, 0.0
  %1100 = vadd.xlane.f32.xlu0 %v1099
  %v1101 = vpop.xlane.xlu0 %1100
  %v1102 = vlaneseq
  %v1103 = vshrl.u32 %v1102, 7
  %v1104 = vsub.s32 4, %v1103
  %v1105 = vrot.slane %v27, %v1104
  %v1106 = vadd.f32 %v1101, %v1105
  %vm1107 = vcmask 1024
  %1108 = vst.msk [vmem:[%s3] sm:$0x3] %vm1107, %v1106
  // Predicated region
  $region14: #{net_forward.1} parent=0 // pred_check
    _
  $region15: #{net_forward.1} parent=0 // pred_check_branch
    %1110 = sbr.rel (0) target = $region17
  $region16: #{net_forward.1} parent=0 // pred_region
    _
  $region17: #{net_forward.1} parent=0 // pred_fallthru
    _
  // Predicated region
  $region18: #{net_forward.1} parent=0 // pred_check
    _
  $region19: #{net_forward.1} parent=0 // pred_check_branch
    %1112 = sbr.rel (0) target = $region21
  $region20: #{net_forward.1} parent=0 // pred_region
    _
  $region21: #{net_forward.1} parent=0 // pred_fallthru
    _

</llo_original>
